<compile_context>
chip_gen: v7x
topology: tpu7x:2x2x1
jax: 0.10.0
libtpu: 0.0.40
codegen_flags: <defaults>
</compile_context>

<pallas_src>
import functools

import jax
import jax.numpy as jnp
import numpy as np
from jax.experimental import pallas as pl
from jax.experimental.pallas import tpu as pltpu


def _block_kernel(x_ref, w_ref, o_ref, xs_ref, *, dilations, ksize, seg_len):
    # x_ref : (C, N)              N = B*L, channels on sublanes, batch*length on lanes
    # w_ref : (depth, C, Kc_pad)  fused tap weights, bias folded at column K*C
    # o_ref : (C, N)
    # xs_ref: (Kc_pad, N)         persistent fused-operand scratch
    C, N = x_ref.shape
    Kc = ksize * C
    Kc_pad = xs_ref.shape[0]
    half = ksize // 2

    # Within-batch lane position (batch elements are stacked along lanes);
    # hoisted once and reused for every tap mask.
    lane_mod = jax.lax.broadcasted_iota(jnp.int32, (1, N), 1) % seg_len

    # One-time init of the operand rows beyond the taps: row Kc is the
    # ones-row that realizes the bias, rows Kc+1.. are zero padding to 128.
    pad_rows = Kc_pad - Kc
    row_idx = jax.lax.broadcasted_iota(jnp.int32, (pad_rows, N), 0)
    xs_ref[pl.ds(Kc, pad_rows), :] = (row_idx == 0).astype(jnp.float32)

    x = x_ref[...].astype(jnp.float32)
    for i, d in enumerate(dilations):          # static loop over layers
        for k in range(ksize):                 # static loop over conv taps
            s = (k - half) * d                 # tap reads x[:, l + s] (zero padded)
            if s == 0:
                tap = x
            else:
                # pltpu.roll: result[l] = x[(l - shift) % N]; shift = -s
                rolled = pltpu.roll(x, (-s) % N, axis=1)
                if s < 0:
                    mask = lane_mod >= (-s)          # within-batch l + s >= 0
                else:
                    mask = lane_mod < (seg_len - s)  # within-batch l + s < L
                tap = jnp.where(mask, rolled, 0.0)
            xs_ref[pl.ds(k * C, C), :] = tap
        # One fused MXU matmul per layer: (C, Kc_pad) x (Kc_pad, N); the bias
        # rides along via the ones-row.
        y = jnp.dot(w_ref[i], xs_ref[...], preferred_element_type=jnp.float32)
        x = jnp.maximum(y, 0.0) + x            # ReLU + residual
    o_ref[...] = x.astype(o_ref.dtype)


def dilated_conv1d_block(x_ncl, w_oih, b, dilations):
    """x_ncl: (B, C, L) f32.  w_oih: (depth, C_out, C_in, K).  b: (depth, C)."""
    B, C, L = x_ncl.shape
    depth, C_out, C_in, K = w_oih.shape
    assert C_out == C and C_in == C
    # roll+mask tap construction requires the max tap offset to stay inside one
    # batch segment.
    assert max(int(d) for d in dilations) * (K // 2) < L

    N = B * L
    Kc = K * C
    Kc_pad = ((Kc + 1 + 127) // 128) * 128     # taps + bias row, lane-padded

    # Fused weight: w_pack[i, c_out, k*C + c_in] = w_oih[i, c_out, c_in, k];
    # bias folded in at column Kc; zero-padded to Kc_pad lanes.
    w_fused = jnp.transpose(w_oih, (0, 1, 3, 2)).reshape(depth, C, Kc)
    w_pack = jnp.zeros((depth, C, Kc_pad), jnp.float32)
    w_pack = w_pack.at[:, :, :Kc].set(w_fused.astype(jnp.float32))
    w_pack = w_pack.at[:, :, Kc].set(b.astype(jnp.float32))

    # Lane-stack the batch: (B, C, L) -> (C, B*L).  Wrapper-side layout
    # plumbing so every kernel access is lane-dense.
    x_cn = jnp.transpose(x_ncl, (1, 0, 2)).reshape(C, N)

    kernel = functools.partial(
        _block_kernel,
        dilations=tuple(int(d) for d in dilations),
        ksize=int(K),
        seg_len=int(L))

    out_cn = pl.pallas_call(
        kernel,
        out_shape=jax.ShapeDtypeStruct((C, N), x_ncl.dtype),
        grid_spec=pltpu.PrefetchScalarGridSpec(
            num_scalar_prefetch=0,
            grid=(1,),                          # single step: launch-latency bound
            in_specs=[
                pl.BlockSpec((C, N), lambda g: (0, 0)),
                pl.BlockSpec((depth, C, Kc_pad), lambda g: (0, 0, 0)),
            ],
            out_specs=pl.BlockSpec((C, N), lambda g: (0, 0)),
            scratch_shapes=[pltpu.VMEM((Kc_pad, N), jnp.float32)],
        ),
        compiler_params=pltpu.CompilerParams(
            dimension_semantics=("arbitrary",)),
    )(x_cn, w_pack)

    return jnp.transpose(out_cn.reshape(C, B, L), (1, 0, 2))


def reference_forward(x_ncl, w_oih_list, b_list, dilations):
    """Pure-JAX reference matching torch Conv1d(padding='same') + ReLU + residual."""
    x = x_ncl
    for w, bias, d in zip(w_oih_list, b_list, dilations):
        out = jax.lax.conv_general_dilated(
            x, w, window_strides=(1,), padding="SAME",
            rhs_dilation=(int(d),),
            dimension_numbers=("NCH", "OIH", "NCH"))
        out = out + bias[None, :, None]
        x = jnp.maximum(out, 0.0) + x
    return x


if __name__ == "__main__":
    # Small shapes consistent with the module: (batch, hidden_dim, length)
    batch, hidden_dim, length = 2, 32, 128
    depth, ksize = 3, 3
    dilations = [2 ** (i + 1) for i in range(depth)]   # 2, 4, 8

    key = jax.random.PRNGKey(0)
    kx, kw, kb = jax.random.split(key, 3)

    x = jax.random.uniform(kx, (batch, hidden_dim, length), dtype=jnp.float32)

    # Deterministic synthetic parameters (Conv1d weight shape: (C_out, C_in, K)).
    scale = 1.0 / np.sqrt(hidden_dim * ksize)
    w_oih = jax.random.uniform(
        kw, (depth, hidden_dim, hidden_dim, ksize),
        minval=-scale, maxval=scale, dtype=jnp.float32)
    b = jax.random.uniform(
        kb, (depth, hidden_dim), minval=-scale, maxval=scale,
        dtype=jnp.float32)

    out = dilated_conv1d_block(x, w_oih, b, dilations)
    out = jax.block_until_ready(out)

    ref = reference_forward(
        x, [w_oih[i] for i in range(depth)], [b[i] for i in range(depth)],
        dilations)
    np.testing.assert_allclose(np.asarray(out), np.asarray(ref),
                               rtol=1e-4, atol=1e-4)

    print("KERNEL_OK")
</pallas_src>

<mosaic_0001>
module attributes {stable_mosaic.version = 11 : i64} {
  func.func @_block_kernel(%arg0: i32, %arg1: memref<32x256xf32, #tpu.memory_space<vmem>>, %arg2: memref<3x32x128xf32, #tpu.memory_space<vmem>>, %arg3: memref<32x256xf32, #tpu.memory_space<vmem>>, %arg4: memref<128x256xf32, #tpu.memory_space<vmem>>) attributes {dimension_semantics = [#tpu.dimension_semantics<arbitrary>], iteration_bounds = array<i64: 1>, scalar_prefetch = 0 : i64, scratch_operands = 1 : i64, tpu.core_type = #tpu.core_type<tc>, window_params = [{pipeline_mode = #tpu.pipeline_mode<synchronous>, transform_indices = @transform_0, window_bounds = array<i64: 32, 256>}, {pipeline_mode = #tpu.pipeline_mode<synchronous>, transform_indices = @transform_1, window_bounds = array<i64: 3, 32, 128>}, {pipeline_mode = #tpu.pipeline_mode<synchronous>, transform_indices = @transform_2, window_bounds = array<i64: 32, 256>}]} {
    %0 = tpu.iota {dimensions = array<i32: 1>} : vector<1x256xi32>
    %c128_i32 = arith.constant 128 : i32
    %c0_i32 = arith.constant 0 : i32
    %1 = arith.cmpi eq, %c128_i32, %c0_i32 : i32
    %c1_i32 = arith.constant 1 : i32
    %2 = arith.select %1, %c1_i32, %c128_i32 : i32
    %3 = vector.broadcast %2 : i32 to vector<1x256xi32>
    %4 = arith.remsi %0, %3 : vector<1x256xi32>
    %c0_i32_0 = arith.constant 0 : i32
    %5 = vector.broadcast %c0_i32_0 : i32 to vector<1x256xi32>
    %6 = arith.cmpi ne, %4, %5 : vector<1x256xi32>
    %c0_i32_1 = arith.constant 0 : i32
    %7 = vector.broadcast %c0_i32_1 : i32 to vector<1x256xi32>
    %8 = arith.cmpi slt, %4, %7 : vector<1x256xi32>
    %c0_i32_2 = arith.constant 0 : i32
    %9 = arith.cmpi slt, %2, %c0_i32_2 : i32
    %10 = vector.broadcast %9 : i1 to vector<1x256xi1>
    %11 = vector.broadcast %10 : vector<1x256xi1> to vector<1x256xi1>
    %12 = arith.xori %8, %11 : vector<1x256xi1>
    %13 = arith.andi %12, %6 : vector<1x256xi1>
    %14 = vector.broadcast %2 : i32 to vector<1x256xi32>
    %15 = arith.addi %4, %14 : vector<1x256xi32>
    %16 = arith.select %13, %15, %4 : vector<1x256xi1>, vector<1x256xi32>
    %17 = tpu.iota {dimensions = array<i32: 0>} : vector<32x256xi32>
    %c0_i32_3 = arith.constant 0 : i32
    %18 = vector.broadcast %c0_i32_3 : i32 to vector<32x256xi32>
    %19 = arith.cmpi eq, %17, %18 : vector<32x256xi32>
    %20 = arith.extui %19 : vector<32x256xi1> to vector<32x256xi32>
    %21 = arith.sitofp %20 : vector<32x256xi32> to vector<32x256xf32>
    %c96 = arith.constant 96 : index
    %c0 = arith.constant 0 : index
    %22 = vector.load %arg4[%c96, %c0] : memref<128x256xf32, #tpu.memory_space<vmem>>, vector<32x256xf32>
    tpu.vector_store %arg4[%c96, %c0], %21 {strides = array<i32>} : memref<128x256xf32, #tpu.memory_space<vmem>>, vector<32x256xf32>,
    %c0_4 = arith.constant 0 : index
    %c0_5 = arith.constant 0 : index
    %23 = vector.load %arg1[%c0_4, %c0_5] : memref<32x256xf32, #tpu.memory_space<vmem>>, vector<32x256xf32>
    %c2_i32 = arith.constant 2 : i32
    %24 = tpu.dynamic_rotate %23 by %c2_i32 dim 1 : vector<32x256xf32>, i32 -> vector<32x256xf32>
    %c2_i32_6 = arith.constant 2 : i32
    %25 = vector.broadcast %c2_i32_6 : i32 to vector<1x256xi32>
    %26 = arith.cmpi sge, %16, %25 : vector<1x256xi32>
    %cst = arith.constant 0.000000e+00 : f32
    %27 = vector.shape_cast %26 : vector<1x256xi1> to vector<1x256xi1>
    %28 = vector.broadcast %27 : vector<1x256xi1> to vector<32x256xi1>
    %29 = vector.broadcast %cst : f32 to vector<32x256xf32>
    %30 = arith.select %28, %24, %29 : vector<32x256xi1>, vector<32x256xf32>
    %c0_7 = arith.constant 0 : index
    %c0_8 = arith.constant 0 : index
    %31 = vector.load %arg4[%c0_7, %c0_8] : memref<128x256xf32, #tpu.memory_space<vmem>>, vector<32x256xf32>
    tpu.vector_store %arg4[%c0_7, %c0_8], %30 {strides = array<i32>} : memref<128x256xf32, #tpu.memory_space<vmem>>, vector<32x256xf32>,
    %c32 = arith.constant 32 : index
    %c0_9 = arith.constant 0 : index
    %32 = vector.load %arg4[%c32, %c0_9] : memref<128x256xf32, #tpu.memory_space<vmem>>, vector<32x256xf32>
    tpu.vector_store %arg4[%c32, %c0_9], %23 {strides = array<i32>} : memref<128x256xf32, #tpu.memory_space<vmem>>, vector<32x256xf32>,
    %c254_i32 = arith.constant 254 : i32
    %33 = tpu.dynamic_rotate %23 by %c254_i32 dim 1 : vector<32x256xf32>, i32 -> vector<32x256xf32>
    %c126_i32 = arith.constant 126 : i32
    %34 = vector.broadcast %c126_i32 : i32 to vector<1x256xi32>
    %35 = arith.cmpi slt, %16, %34 : vector<1x256xi32>
    %cst_10 = arith.constant 0.000000e+00 : f32
    %36 = vector.shape_cast %35 : vector<1x256xi1> to vector<1x256xi1>
    %37 = vector.broadcast %36 : vector<1x256xi1> to vector<32x256xi1>
    %38 = vector.broadcast %cst_10 : f32 to vector<32x256xf32>
    %39 = arith.select %37, %33, %38 : vector<32x256xi1>, vector<32x256xf32>
    %c64 = arith.constant 64 : index
    %c0_11 = arith.constant 0 : index
    %40 = vector.load %arg4[%c64, %c0_11] : memref<128x256xf32, #tpu.memory_space<vmem>>, vector<32x256xf32>
    tpu.vector_store %arg4[%c64, %c0_11], %39 {strides = array<i32>} : memref<128x256xf32, #tpu.memory_space<vmem>>, vector<32x256xf32>,
    %c0_12 = arith.constant 0 : index
    %c0_13 = arith.constant 0 : index
    %c0_14 = arith.constant 0 : index
    %41 = vector.load %arg2[%c0_12, %c0_13, %c0_14] : memref<3x32x128xf32, #tpu.memory_space<vmem>>, vector<1x32x128xf32>
    %42 = vector.shape_cast %41 : vector<1x32x128xf32> to vector<32x128xf32>
    %c0_15 = arith.constant 0 : index
    %c0_16 = arith.constant 0 : index
    %43 = vector.load %arg4[%c0_15, %c0_16] : memref<128x256xf32, #tpu.memory_space<vmem>>, vector<128x256xf32>
    %cst_17 = arith.constant dense<0.000000e+00> : vector<32x256xf32>
    %44 = tpu.matmul %42, %43, %cst_17 {dimension_numbers = #tpu.dot_dimension_numbers<[1], [0], [0], [1], [0, 0, 1, 1], [], []>} : vector<32x128xf32>, vector<128x256xf32>, vector<32x256xf32> -> vector<32x256xf32>
    %cst_18 = arith.constant 0.000000e+00 : f32
    %45 = vector.broadcast %cst_18 : f32 to vector<32x256xf32>
    %46 = arith.maximumf %44, %45 : vector<32x256xf32>
    %47 = arith.addf %46, %23 : vector<32x256xf32>
    %c4_i32 = arith.constant 4 : i32
    %48 = tpu.dynamic_rotate %47 by %c4_i32 dim 1 : vector<32x256xf32>, i32 -> vector<32x256xf32>
    %c4_i32_19 = arith.constant 4 : i32
    %49 = vector.broadcast %c4_i32_19 : i32 to vector<1x256xi32>
    %50 = arith.cmpi sge, %16, %49 : vector<1x256xi32>
    %cst_20 = arith.constant 0.000000e+00 : f32
    %51 = vector.shape_cast %50 : vector<1x256xi1> to vector<1x256xi1>
    %52 = vector.broadcast %51 : vector<1x256xi1> to vector<32x256xi1>
    %53 = vector.broadcast %cst_20 : f32 to vector<32x256xf32>
    %54 = arith.select %52, %48, %53 : vector<32x256xi1>, vector<32x256xf32>
    %c0_21 = arith.constant 0 : index
    %c0_22 = arith.constant 0 : index
    %55 = vector.load %arg4[%c0_21, %c0_22] : memref<128x256xf32, #tpu.memory_space<vmem>>, vector<32x256xf32>
    tpu.vector_store %arg4[%c0_21, %c0_22], %54 {strides = array<i32>} : memref<128x256xf32, #tpu.memory_space<vmem>>, vector<32x256xf32>,
    %c32_23 = arith.constant 32 : index
    %c0_24 = arith.constant 0 : index
    %56 = vector.load %arg4[%c32_23, %c0_24] : memref<128x256xf32, #tpu.memory_space<vmem>>, vector<32x256xf32>
    tpu.vector_store %arg4[%c32_23, %c0_24], %47 {strides = array<i32>} : memref<128x256xf32, #tpu.memory_space<vmem>>, vector<32x256xf32>,
    %c252_i32 = arith.constant 252 : i32
    %57 = tpu.dynamic_rotate %47 by %c252_i32 dim 1 : vector<32x256xf32>, i32 -> vector<32x256xf32>
    %c124_i32 = arith.constant 124 : i32
    %58 = vector.broadcast %c124_i32 : i32 to vector<1x256xi32>
    %59 = arith.cmpi slt, %16, %58 : vector<1x256xi32>
    %cst_25 = arith.constant 0.000000e+00 : f32
    %60 = vector.shape_cast %59 : vector<1x256xi1> to vector<1x256xi1>
    %61 = vector.broadcast %60 : vector<1x256xi1> to vector<32x256xi1>
    %62 = vector.broadcast %cst_25 : f32 to vector<32x256xf32>
    %63 = arith.select %61, %57, %62 : vector<32x256xi1>, vector<32x256xf32>
    %c64_26 = arith.constant 64 : index
    %c0_27 = arith.constant 0 : index
    %64 = vector.load %arg4[%c64_26, %c0_27] : memref<128x256xf32, #tpu.memory_space<vmem>>, vector<32x256xf32>
    tpu.vector_store %arg4[%c64_26, %c0_27], %63 {strides = array<i32>} : memref<128x256xf32, #tpu.memory_space<vmem>>, vector<32x256xf32>,
    %c1 = arith.constant 1 : index
    %c0_28 = arith.constant 0 : index
    %c0_29 = arith.constant 0 : index
    %65 = vector.load %arg2[%c1, %c0_28, %c0_29] : memref<3x32x128xf32, #tpu.memory_space<vmem>>, vector<1x32x128xf32>
    %66 = vector.shape_cast %65 : vector<1x32x128xf32> to vector<32x128xf32>
    %c0_30 = arith.constant 0 : index
    %c0_31 = arith.constant 0 : index
    %67 = vector.load %arg4[%c0_30, %c0_31] : memref<128x256xf32, #tpu.memory_space<vmem>>, vector<128x256xf32>
    %cst_32 = arith.constant dense<0.000000e+00> : vector<32x256xf32>
    %68 = tpu.matmul %66, %67, %cst_32 {dimension_numbers = #tpu.dot_dimension_numbers<[1], [0], [0], [1], [0, 0, 1, 1], [], []>} : vector<32x128xf32>, vector<128x256xf32>, vector<32x256xf32> -> vector<32x256xf32>
    %cst_33 = arith.constant 0.000000e+00 : f32
    %69 = vector.broadcast %cst_33 : f32 to vector<32x256xf32>
    %70 = arith.maximumf %68, %69 : vector<32x256xf32>
    %71 = arith.addf %70, %47 : vector<32x256xf32>
    %c8_i32 = arith.constant 8 : i32
    %72 = tpu.dynamic_rotate %71 by %c8_i32 dim 1 : vector<32x256xf32>, i32 -> vector<32x256xf32>
    %c8_i32_34 = arith.constant 8 : i32
    %73 = vector.broadcast %c8_i32_34 : i32 to vector<1x256xi32>
    %74 = arith.cmpi sge, %16, %73 : vector<1x256xi32>
    %cst_35 = arith.constant 0.000000e+00 : f32
    %75 = vector.shape_cast %74 : vector<1x256xi1> to vector<1x256xi1>
    %76 = vector.broadcast %75 : vector<1x256xi1> to vector<32x256xi1>
    %77 = vector.broadcast %cst_35 : f32 to vector<32x256xf32>
    %78 = arith.select %76, %72, %77 : vector<32x256xi1>, vector<32x256xf32>
    %c0_36 = arith.constant 0 : index
    %c0_37 = arith.constant 0 : index
    %79 = vector.load %arg4[%c0_36, %c0_37] : memref<128x256xf32, #tpu.memory_space<vmem>>, vector<32x256xf32>
    tpu.vector_store %arg4[%c0_36, %c0_37], %78 {strides = array<i32>} : memref<128x256xf32, #tpu.memory_space<vmem>>, vector<32x256xf32>,
    %c32_38 = arith.constant 32 : index
    %c0_39 = arith.constant 0 : index
    %80 = vector.load %arg4[%c32_38, %c0_39] : memref<128x256xf32, #tpu.memory_space<vmem>>, vector<32x256xf32>
    tpu.vector_store %arg4[%c32_38, %c0_39], %71 {strides = array<i32>} : memref<128x256xf32, #tpu.memory_space<vmem>>, vector<32x256xf32>,
    %c248_i32 = arith.constant 248 : i32
    %81 = tpu.dynamic_rotate %71 by %c248_i32 dim 1 : vector<32x256xf32>, i32 -> vector<32x256xf32>
    %c120_i32 = arith.constant 120 : i32
    %82 = vector.broadcast %c120_i32 : i32 to vector<1x256xi32>
    %83 = arith.cmpi slt, %16, %82 : vector<1x256xi32>
    %cst_40 = arith.constant 0.000000e+00 : f32
    %84 = vector.shape_cast %83 : vector<1x256xi1> to vector<1x256xi1>
    %85 = vector.broadcast %84 : vector<1x256xi1> to vector<32x256xi1>
    %86 = vector.broadcast %cst_40 : f32 to vector<32x256xf32>
    %87 = arith.select %85, %81, %86 : vector<32x256xi1>, vector<32x256xf32>
    %c64_41 = arith.constant 64 : index
    %c0_42 = arith.constant 0 : index
    %88 = vector.load %arg4[%c64_41, %c0_42] : memref<128x256xf32, #tpu.memory_space<vmem>>, vector<32x256xf32>
    tpu.vector_store %arg4[%c64_41, %c0_42], %87 {strides = array<i32>} : memref<128x256xf32, #tpu.memory_space<vmem>>, vector<32x256xf32>,
    %c2 = arith.constant 2 : index
    %c0_43 = arith.constant 0 : index
    %c0_44 = arith.constant 0 : index
    %89 = vector.load %arg2[%c2, %c0_43, %c0_44] : memref<3x32x128xf32, #tpu.memory_space<vmem>>, vector<1x32x128xf32>
    %90 = vector.shape_cast %89 : vector<1x32x128xf32> to vector<32x128xf32>
    %c0_45 = arith.constant 0 : index
    %c0_46 = arith.constant 0 : index
    %91 = vector.load %arg4[%c0_45, %c0_46] : memref<128x256xf32, #tpu.memory_space<vmem>>, vector<128x256xf32>
    %cst_47 = arith.constant dense<0.000000e+00> : vector<32x256xf32>
    %92 = tpu.matmul %90, %91, %cst_47 {dimension_numbers = #tpu.dot_dimension_numbers<[1], [0], [0], [1], [0, 0, 1, 1], [], []>} : vector<32x128xf32>, vector<128x256xf32>, vector<32x256xf32> -> vector<32x256xf32>
    %cst_48 = arith.constant 0.000000e+00 : f32
    %93 = vector.broadcast %cst_48 : f32 to vector<32x256xf32>
    %94 = arith.maximumf %92, %93 : vector<32x256xf32>
    %95 = arith.addf %94, %71 : vector<32x256xf32>
    %c0_49 = arith.constant 0 : index
    %c0_50 = arith.constant 0 : index
    %96 = vector.load %arg3[%c0_49, %c0_50] : memref<32x256xf32, #tpu.memory_space<vmem>>, vector<32x256xf32>
    tpu.vector_store %arg3[%c0_49, %c0_50], %95 {strides = array<i32>} : memref<32x256xf32, #tpu.memory_space<vmem>>, vector<32x256xf32>,
    return
  }
  func.func @transform_0(%arg0: i32) -> (i32, i32) {
    %c0_i32 = arith.constant 0 : i32
    %c0_i32_0 = arith.constant 0 : i32
    %c0_i32_1 = arith.constant 0 : i32
    return %c0_i32, %c0_i32_0 : i32, i32
  }
  func.func @transform_1(%arg0: i32) -> (i32, i32, i32) {
    %c0_i32 = arith.constant 0 : i32
    %c0_i32_0 = arith.constant 0 : i32
    %c0_i32_1 = arith.constant 0 : i32
    %c0_i32_2 = arith.constant 0 : i32
    return %c0_i32, %c0_i32_0, %c0_i32_1 : i32, i32, i32
  }
  func.func @transform_2(%arg0: i32) -> (i32, i32) {
    %c0_i32 = arith.constant 0 : i32
    %c0_i32_0 = arith.constant 0 : i32
    %c0_i32_1 = arith.constant 0 : i32
    return %c0_i32, %c0_i32_0 : i32, i32
  }
}

</mosaic_0001>

<llo_original>
// kernel: tpu_custom_call.1
$region0: #{tpu_custom_call.1}
  #allocation0 [shape = 'u32[]', space=smem, size = 0x4, offset = 0x4, fixed_abs, tag = 'smem constant byte address 0x4 - core index']
  #allocation1 [shape = 'u32[144,128]{1,0:T(1,128)}', space=vmem, size = 0x12000, scoped, tag = 'internal scratch']
  #allocation2 [shape = 'f32[128,256]{1,0:T(8,128)}', space=vmem, size = 0x20000, scoped, tag = 'scratch operand']
  %s0 = inlined_call_operand.hbm [shape: f32[32,256], index: 0, kind: input, shape index: {}]
  %s1 = inlined_call_operand.hbm [shape: f32[3,32,128], index: 1, kind: input, shape index: {}]
  %s2 = inlined_call_operand.hbm [shape: f32[32,256], index: 2, kind: output, shape index: {}]
  %s3 = sld [smem:[#allocation0]]
  $region26: #{tpu_custom_call.1} parent=0
    _
  %s5 = ssub.s32 1, %s3
  %s6 = scalar_select 0, %s5, %s3
  $region1: #{tpu_custom_call.1} parent=0
    #allocation3 [shape = 'u8[32768]{0}', space=vmem, size = 0x8000, scoped, tag = 'input window, operand 0, single buffered']
    #allocation4 [shape = 's32[1]{0}', space=sflag, size = 0x4, scoped, tag = 'scoped memory for tpu_custom_call.1']
    #allocation5 [shape = 's32[1]{0}', space=sflag, size = 0x4, scoped, tag = 'scoped memory for tpu_custom_call.1']
    #allocation6 [shape = 'u8[49152]{0}', space=vmem, size = 0xc000, scoped, tag = 'input window, operand 1, single buffered']
    #allocation7 [shape = 's32[1]{0}', space=sflag, size = 0x4, scoped, tag = 'scoped memory for tpu_custom_call.1']
    #allocation8 [shape = 'u8[32768]{0}', space=vmem, size = 0x8000, scoped, tag = 'output window, operand 0, single buffered']
    %7 = vsyncpa [#allocation4], 0
    %8 = vsyncpa [#allocation7], 0
    %9 = vsyncpa [#allocation5], 0
    // Predicated region
    $region2: #{tpu_custom_call.1} parent=1 // pred_check
      _
    $region3: #{tpu_custom_call.1} parent=1 // pred_check_branch
      %11 = sbr.rel (0) target = $region5
    $region4: #{tpu_custom_call.1} parent=1 // pred_region
      %s13 = ssub.s32 1024, 1024
      %14 = vsyncadd [#allocation4], %s13
      %s15 = sshll.u32 [#allocation3], 4
      %s16 = int_to_ptr.vmem [resolvable:$true] %s15
      %21 = dma.hbm_to_vmem [thread:$0]  %s0, 1024, %s16, [#allocation4], 256, 256, 16
    $region5: #{tpu_custom_call.1} parent=1 // pred_fallthru
      _
    // Predicated region
    $region6: #{tpu_custom_call.1} parent=1 // pred_check
      _
    $region7: #{tpu_custom_call.1} parent=1 // pred_check_branch
      %23 = sbr.rel (0) target = $region9
    $region8: #{tpu_custom_call.1} parent=1 // pred_region
      %s25 = ssub.s32 1536, 1536
      %26 = vsyncadd [#allocation7], %s25
      %s27 = sshll.u32 [#allocation6], 4
      %s28 = int_to_ptr.vmem [resolvable:$true] %s27
      %33 = dma.hbm_to_vmem [thread:$0]  %s1, 1536, %s28, [#allocation7], 128, 128, 8
    $region9: #{tpu_custom_call.1} parent=1 // pred_fallthru
      _
    // Predicated region
    $region10: #{tpu_custom_call.1} parent=1 // pred_check
      _
    $region11: #{tpu_custom_call.1} parent=1 // pred_check_branch
      %35 = sbr.rel (0) target = $region13
    $region12: #{tpu_custom_call.1} parent=1 // pred_region
      %36 = dma.done [#allocation4], 1024
    $region13: #{tpu_custom_call.1} parent=1 // pred_fallthru
      _
    // Predicated region
    $region14: #{tpu_custom_call.1} parent=1 // pred_check
      _
    $region15: #{tpu_custom_call.1} parent=1 // pred_check_branch
      %38 = sbr.rel (0) target = $region17
    $region16: #{tpu_custom_call.1} parent=1 // pred_region
      %39 = dma.done [#allocation7], 1536
    $region17: #{tpu_custom_call.1} parent=1 // pred_fallthru
      _
    %v40 = vlaneseq
    %v41 = vand.u32 %v40, 127
    %v42 = vadd.s32 %v41, 128
    %vm43 = vcmp.lt.s32.totalorder %v41, 0
    %v44 = vsub.s32 0, %v41
    %v45 = vsel %vm43, %v44, %v41
    %v46 = vshrl.u32 %v45, 7
    %v47 = vand.u32 %v45, 127
    %v48 = vsub.s32 0, %v47
    %v49 = vsel %vm43, %v48, %v47
    %vm50 = vcmp.lt.s32.totalorder %v42, 0
    %v51 = vsub.s32 0, %v42
    %v52 = vsel %vm50, %v51, %v42
    %v53 = vshrl.u32 %v52, 7
    %v54 = vand.u32 %v52, 127
    %v55 = vsub.s32 0, %v54
    %v56 = vsel %vm50, %v55, %v54
    %vm57 = vcmp.ne.s32.totalorder %v49, 0
    %vm58 = vcmp.ne.s32.totalorder %v56, 0
    %vm59 = vcmp.lt.s32.totalorder %v49, 0
    %vm60 = vcmp.lt.s32.totalorder %v56, 0
    %vm61 = vmand %vm59, %vm57
    %vm62 = vmand %vm60, %vm58
    %v63 = vadd.s32 %v49, 128
    %v64 = vadd.s32 %v56, 128
    %v65 = vsel %vm61, %v63, %v49
    %v66 = vsel %vm62, %v64, %v56
    %v67 = vlaneseq
    %v68 = vshrl.u32 %v67, 7
    %v69 = vadd.s32 %v68, 8
    %v70 = vadd.s32 %v68, 16
    %v71 = vadd.s32 %v68, 24
    %vm72 = vcmp.eq.s32.totalorder %v68, 0
    %vm73 = vcmp.eq.s32.totalorder %v69, 0
    %vm74 = vcmp.eq.s32.totalorder %v70, 0
    %vm75 = vcmp.eq.s32.totalorder %v71, 0
    %v76 = vsel %vm72, 1, 0
    %v77 = vsel %vm73, 1, 0
    %v78 = vsel %vm74, 1, 0
    %v79 = vsel %vm75, 1, 0
    %v80 = vcvt.s32.f32 %v76
    %v81 = vcvt.s32.f32 %v77
    %v82 = vcvt.s32.f32 %v78
    %v83 = vcvt.s32.f32 %v79
    %84 = vst [vmem:[#allocation2 + $0xc0] sm:$0xff] %v80
    %85 = vst [vmem:[#allocation2 + $0xc8] sm:$0xff] %v80
    %86 = vst [vmem:[#allocation2 + $0xd0] sm:$0xff] %v81
    %87 = vst [vmem:[#allocation2 + $0xd8] sm:$0xff] %v81
    %88 = vst [vmem:[#allocation2 + $0xe0] sm:$0xff] %v82
    %89 = vst [vmem:[#allocation2 + $0xe8] sm:$0xff] %v82
    %90 = vst [vmem:[#allocation2 + $0xf0] sm:$0xff] %v83
    %91 = vst [vmem:[#allocation2 + $0xf8] sm:$0xff] %v83
    %v92 = vld [vmem:[#allocation3] sm:$0xff]
    %v93 = vld [vmem:[#allocation3 + $0x8] sm:$0xff]
    %v94 = vld [vmem:[#allocation3 + $0x10] sm:$0xff]
    %v95 = vld [vmem:[#allocation3 + $0x18] sm:$0xff]
    %v96 = vld [vmem:[#allocation3 + $0x20] sm:$0xff]
    %v97 = vld [vmem:[#allocation3 + $0x28] sm:$0xff]
    %v98 = vld [vmem:[#allocation3 + $0x30] sm:$0xff]
    %v99 = vld [vmem:[#allocation3 + $0x38] sm:$0xff]
    %100 = vrot.lane.b32.xlu0 %v92, 2
    %v101 = vpop.permute.xlu0 %100
    %102 = vrot.lane.b32.xlu0 %v94, 2
    %v103 = vpop.permute.xlu0 %102
    %104 = vrot.lane.b32.xlu0 %v96, 2
    %v105 = vpop.permute.xlu0 %104
    %106 = vrot.lane.b32.xlu0 %v98, 2
    %v107 = vpop.permute.xlu0 %106
    %108 = vrot.lane.b32.xlu0 %v93, 2
    %v109 = vpop.permute.xlu0 %108
    %110 = vrot.lane.b32.xlu0 %v95, 2
    %v111 = vpop.permute.xlu0 %110
    %112 = vrot.lane.b32.xlu0 %v97, 2
    %v113 = vpop.permute.xlu0 %112
    %114 = vrot.lane.b32.xlu0 %v99, 2
    %v115 = vpop.permute.xlu0 %114
    %vm116 = vcmp.lt.s32.totalorder %v41, 2
    %v117 = vsel %vm116, %v101, %v109
    %v118 = vsel %vm116, %v103, %v111
    %v119 = vsel %vm116, %v105, %v113
    %v120 = vsel %vm116, %v107, %v115
    %v121 = vsel %vm116, %v109, %v101
    %v122 = vsel %vm116, %v111, %v103
    %v123 = vsel %vm116, %v113, %v105
    %v124 = vsel %vm116, %v115, %v107
    %vm125 = vcmp.ge.s32.totalorder %v65, 2
    %vm126 = vcmp.ge.s32.totalorder %v66, 2
    %v127 = vsel %vm125, 1, 0
    %v128 = vsel %vm126, 1, 0
    %vm129 = vcmp.eq.s32.totalorder %v127, 1
    %vm130 = vcmp.eq.s32.totalorder %v128, 1
    %v131 = vsel %vm129, %v121, 0.0
    %v132 = vsel %vm130, %v117, 0.0
    %v133 = vsel %vm129, %v122, 0.0
    %v134 = vsel %vm130, %v118, 0.0
    %v135 = vsel %vm129, %v123, 0.0
    %v136 = vsel %vm130, %v119, 0.0
    %v137 = vsel %vm129, %v124, 0.0
    %v138 = vsel %vm130, %v120, 0.0
    %139 = vst [vmem:[#allocation2] sm:$0xff] %v131
    %140 = vst [vmem:[#allocation2 + $0x8] sm:$0xff] %v132
    %141 = vst [vmem:[#allocation2 + $0x10] sm:$0xff] %v133
    %142 = vst [vmem:[#allocation2 + $0x18] sm:$0xff] %v134
    %143 = vst [vmem:[#allocation2 + $0x20] sm:$0xff] %v135
    %144 = vst [vmem:[#allocation2 + $0x28] sm:$0xff] %v136
    %145 = vst [vmem:[#allocation2 + $0x30] sm:$0xff] %v137
    %146 = vst [vmem:[#allocation2 + $0x38] sm:$0xff] %v138
    %147 = vst [vmem:[#allocation2 + $0x40] sm:$0xff] %v92
    %148 = vst [vmem:[#allocation2 + $0x48] sm:$0xff] %v93
    %149 = vst [vmem:[#allocation2 + $0x50] sm:$0xff] %v94
    %150 = vst [vmem:[#allocation2 + $0x58] sm:$0xff] %v95
    %151 = vst [vmem:[#allocation2 + $0x60] sm:$0xff] %v96
    %152 = vst [vmem:[#allocation2 + $0x68] sm:$0xff] %v97
    %153 = vst [vmem:[#allocation2 + $0x70] sm:$0xff] %v98
    %154 = vst [vmem:[#allocation2 + $0x78] sm:$0xff] %v99
    %155 = vrot.lane.b32.xlu0 %v92, 126
    %v156 = vpop.permute.xlu0 %155
    %157 = vrot.lane.b32.xlu0 %v94, 126
    %v158 = vpop.permute.xlu0 %157
    %159 = vrot.lane.b32.xlu0 %v96, 126
    %v160 = vpop.permute.xlu0 %159
    %161 = vrot.lane.b32.xlu0 %v98, 126
    %v162 = vpop.permute.xlu0 %161
    %163 = vrot.lane.b32.xlu0 %v93, 126
    %v164 = vpop.permute.xlu0 %163
    %165 = vrot.lane.b32.xlu0 %v95, 126
    %v166 = vpop.permute.xlu0 %165
    %167 = vrot.lane.b32.xlu0 %v97, 126
    %v168 = vpop.permute.xlu0 %167
    %169 = vrot.lane.b32.xlu0 %v99, 126
    %v170 = vpop.permute.xlu0 %169
    %vm171 = vcmp.lt.s32.totalorder %v41, 126
    %v172 = vsel %vm171, %v156, %v164
    %v173 = vsel %vm171, %v158, %v166
    %v174 = vsel %vm171, %v160, %v168
    %v175 = vsel %vm171, %v162, %v170
    %v176 = vsel %vm171, %v164, %v156
    %v177 = vsel %vm171, %v166, %v158
    %v178 = vsel %vm171, %v168, %v160
    %v179 = vsel %vm171, %v170, %v162
    %vm180 = vcmp.lt.s32.totalorder %v65, 126
    %vm181 = vcmp.lt.s32.totalorder %v66, 126
    %v182 = vsel %vm180, 1, 0
    %v183 = vsel %vm181, 1, 0
    %vm184 = vcmp.eq.s32.totalorder %v182, 1
    %vm185 = vcmp.eq.s32.totalorder %v183, 1
    %v186 = vsel %vm184, %v172, 0.0
    %v187 = vsel %vm185, %v176, 0.0
    %v188 = vsel %vm184, %v173, 0.0
    %v189 = vsel %vm185, %v177, 0.0
    %v190 = vsel %vm184, %v174, 0.0
    %v191 = vsel %vm185, %v178, 0.0
    %v192 = vsel %vm184, %v175, 0.0
    %v193 = vsel %vm185, %v179, 0.0
    %194 = vst [vmem:[#allocation2 + $0x80] sm:$0xff] %v186
    %195 = vst [vmem:[#allocation2 + $0x88] sm:$0xff] %v187
    %196 = vst [vmem:[#allocation2 + $0x90] sm:$0xff] %v188
    %197 = vst [vmem:[#allocation2 + $0x98] sm:$0xff] %v189
    %198 = vst [vmem:[#allocation2 + $0xa0] sm:$0xff] %v190
    %199 = vst [vmem:[#allocation2 + $0xa8] sm:$0xff] %v191
    %200 = vst [vmem:[#allocation2 + $0xb0] sm:$0xff] %v192
    %201 = vst [vmem:[#allocation2 + $0xb8] sm:$0xff] %v193
    %v202 = vld [vmem:[#allocation6] sm:$0xff]
    %v203 = vld [vmem:[#allocation6 + $0x8] sm:$0xff]
    %v204 = vld [vmem:[#allocation6 + $0x10] sm:$0xff]
    %v205 = vld [vmem:[#allocation6 + $0x18] sm:$0xff]
    %v206 = vld [vmem:[#allocation2] sm:$0xff]
    %v207 = vld [vmem:[#allocation2 + $0x8] sm:$0xff]
    %v208 = vld [vmem:[#allocation2 + $0x10] sm:$0xff]
    %v209 = vld [vmem:[#allocation2 + $0x18] sm:$0xff]
    %v210 = vld [vmem:[#allocation2 + $0x20] sm:$0xff]
    %v211 = vld [vmem:[#allocation2 + $0x28] sm:$0xff]
    %v212 = vld [vmem:[#allocation2 + $0x30] sm:$0xff]
    %v213 = vld [vmem:[#allocation2 + $0x38] sm:$0xff]
    %v214 = vld [vmem:[#allocation2 + $0x40] sm:$0xff]
    %v215 = vld [vmem:[#allocation2 + $0x48] sm:$0xff]
    %v216 = vld [vmem:[#allocation2 + $0x50] sm:$0xff]
    %v217 = vld [vmem:[#allocation2 + $0x58] sm:$0xff]
    %v218 = vld [vmem:[#allocation2 + $0x60] sm:$0xff]
    %v219 = vld [vmem:[#allocation2 + $0x68] sm:$0xff]
    %v220 = vld [vmem:[#allocation2 + $0x70] sm:$0xff]
    %v221 = vld [vmem:[#allocation2 + $0x78] sm:$0xff]
    %v222 = vld [vmem:[#allocation2 + $0x80] sm:$0xff]
    %v223 = vld [vmem:[#allocation2 + $0x88] sm:$0xff]
    %v224 = vld [vmem:[#allocation2 + $0x90] sm:$0xff]
    %v225 = vld [vmem:[#allocation2 + $0x98] sm:$0xff]
    %v226 = vld [vmem:[#allocation2 + $0xa0] sm:$0xff]
    %v227 = vld [vmem:[#allocation2 + $0xa8] sm:$0xff]
    %v228 = vld [vmem:[#allocation2 + $0xb0] sm:$0xff]
    %v229 = vld [vmem:[#allocation2 + $0xb8] sm:$0xff]
    %v230 = vld [vmem:[#allocation2 + $0xc0] sm:$0xff]
    %v231 = vld [vmem:[#allocation2 + $0xc8] sm:$0xff]
    %v232 = vld [vmem:[#allocation2 + $0xd0] sm:$0xff]
    %v233 = vld [vmem:[#allocation2 + $0xd8] sm:$0xff]
    %v234 = vld [vmem:[#allocation2 + $0xe0] sm:$0xff]
    %v235 = vld [vmem:[#allocation2 + $0xe8] sm:$0xff]
    %v236 = vld [vmem:[#allocation2 + $0xf0] sm:$0xff]
    %v237 = vld [vmem:[#allocation2 + $0xf8] sm:$0xff]
    %238 = vmatprep.subr.mxu0 %v207
    %239 = vmatpush1.msra.mxu0 %v206
    %240 = vmatprep.subr.mxu0 %v209
    %241 = vmatpush1.msra.mxu0 %v208
    %242 = vmatprep.subr.mxu0 %v211
    %243 = vmatpush1.msra.mxu0 %v210
    %244 = vmatprep.subr.mxu0 %v213
    %245 = vmatpush1.msra.mxu0 %v212
    %246 = vmatprep.subr.mxu0 %v215
    %247 = vmatpush1.msra.mxu0 %v214
    %248 = vmatprep.subr.mxu0 %v217
    %249 = vmatpush1.msra.mxu0 %v216
    %250 = vmatprep.subr.mxu0 %v219
    %251 = vmatpush1.msra.mxu0 %v218
    %252 = vmatprep.subr.mxu0 %v221
    %253 = vmatpush1.msra.mxu0 %v220
    %254 = vmatprep.subr.mxu0 %v223
    %255 = vmatpush1.msra.mxu0 %v222
    %256 = vmatprep.subr.mxu0 %v225
    %257 = vmatpush1.msra.mxu0 %v224
    %258 = vmatprep.subr.mxu0 %v227
    %259 = vmatpush1.msra.mxu0 %v226
    %260 = vmatprep.subr.mxu0 %v229
    %261 = vmatpush1.msra.mxu0 %v228
    %262 = vmatprep.subr.mxu0 %v231
    %263 = vmatpush1.msra.mxu0 %v230
    %264 = vmatprep.subr.mxu0 %v233
    %265 = vmatpush1.msra.mxu0 %v232
    %266 = vmatprep.subr.mxu0 %v235
    %267 = vmatpush1.msra.mxu0 %v234
    %268 = vmatprep.subr.mxu0 %v237
    %269 = vmatpush1.msra.mxu0 %v236
    %270 = vmatprep.subr.mxu0 0.0
    %271 = vmatpush1.msra.mxu0 0.0
    %272 = vmatprep.subr.mxu0 0.0
    %273 = vmatpush1.msra.mxu0 0.0
    %274 = vmatprep.subr.mxu0 0.0
    %275 = vmatpush1.msra.mxu0 0.0
    %276 = vmatprep.subr.mxu0 0.0
    %277 = vmatpush1.msra.mxu0 0.0
    %278 = vmatprep.subr.mxu0 0.0
    %279 = vmatpush1.msra.mxu0 0.0
    %280 = vmatprep.subr.mxu0 0.0
    %281 = vmatpush1.msra.mxu0 0.0
    %282 = vmatprep.subr.mxu0 0.0
    %283 = vmatpush1.msra.mxu0 0.0
    %284 = vmatprep.subr.mxu0 0.0
    %285 = vmatpush1.msra.mxu0 0.0
    %286 = vmatprep.subr.mxu0 0.0
    %287 = vmatpush1.msra.mxu0 0.0
    %288 = vmatprep.subr.mxu0 0.0
    %289 = vmatpush1.msra.mxu0 0.0
    %290 = vmatprep.subr.mxu0 0.0
    %291 = vmatpush1.msra.mxu0 0.0
    %292 = vmatprep.subr.mxu0 0.0
    %293 = vmatpush1.msra.mxu0 0.0
    %294 = vmatprep.subr.mxu0 0.0
    %295 = vmatpush1.msra.mxu0 0.0
    %296 = vmatprep.subr.mxu0 0.0
    %297 = vmatpush1.msra.mxu0 0.0
    %298 = vmatprep.subr.mxu0 0.0
    %299 = vmatpush1.msra.mxu0 0.0
    %300 = vmatprep.subr.mxu0 0.0
    %301 = vmatpush1.msra.mxu0 0.0
    %302 = vmatprep.mubr.f32.mxu0 0.0
    %303 = vmatmul.mubr.f32.gmra.mrb[0].mxu0 %v202
    %v304 = vpop.f32.mrb[0].mxu0
    %v305 = vadd.f32 0.0, %v304
    %v306 = vpop.f32.mrb[0].mxu0
    %v307 = vadd.f32 0.0, %v306
    %308 = vmatprep.mubr.f32.mxu0 0.0
    %309 = vmatmul.mubr.f32.gmra.mrb[0].mxu0 %v203
    %v310 = vpop.f32.mrb[0].mxu0
    %v311 = vadd.f32 0.0, %v310
    %v312 = vpop.f32.mrb[0].mxu0
    %v313 = vadd.f32 0.0, %v312
    %314 = vmatprep.mubr.f32.mxu0 0.0
    %315 = vmatmul.mubr.f32.gmra.mrb[0].mxu0 %v204
    %v316 = vpop.f32.mrb[0].mxu0
    %v317 = vadd.f32 0.0, %v316
    %v318 = vpop.f32.mrb[0].mxu0
    %v319 = vadd.f32 0.0, %v318
    %320 = vmatprep.mubr.f32.mxu0 0.0
    %321 = vmatmul.mubr.f32.gmra.mrb[0].mxu0 %v205
    %v322 = vpop.f32.mrb[0].mxu0
    %v323 = vadd.f32 0.0, %v322
    %v324 = vpop.f32.mrb[0].mxu0
    %v325 = vadd.f32 0.0, %v324
    %326 = vdwg.mxu0
    %v327 = vmax.f32 %v305, 0.0
    %v328 = vmax.f32 %v307, 0.0
    %v329 = vmax.f32 %v311, 0.0
    %v330 = vmax.f32 %v313, 0.0
    %v331 = vmax.f32 %v317, 0.0
    %v332 = vmax.f32 %v319, 0.0
    %v333 = vmax.f32 %v323, 0.0
    %v334 = vmax.f32 %v325, 0.0
    %v335 = vadd.f32 %v327, %v92
    %v336 = vadd.f32 %v328, %v93
    %v337 = vadd.f32 %v329, %v94
    %v338 = vadd.f32 %v330, %v95
    %v339 = vadd.f32 %v331, %v96
    %v340 = vadd.f32 %v332, %v97
    %v341 = vadd.f32 %v333, %v98
    %v342 = vadd.f32 %v334, %v99
    %343 = vrot.lane.b32.xlu0 %v335, 4
    %v344 = vpop.permute.xlu0 %343
    %345 = vrot.lane.b32.xlu0 %v337, 4
    %v346 = vpop.permute.xlu0 %345
    %347 = vrot.lane.b32.xlu0 %v339, 4
    %v348 = vpop.permute.xlu0 %347
    %349 = vrot.lane.b32.xlu0 %v341, 4
    %v350 = vpop.permute.xlu0 %349
    %351 = vrot.lane.b32.xlu0 %v336, 4
    %v352 = vpop.permute.xlu0 %351
    %353 = vrot.lane.b32.xlu0 %v338, 4
    %v354 = vpop.permute.xlu0 %353
    %355 = vrot.lane.b32.xlu0 %v340, 4
    %v356 = vpop.permute.xlu0 %355
    %357 = vrot.lane.b32.xlu0 %v342, 4
    %v358 = vpop.permute.xlu0 %357
    %vm359 = vcmp.lt.s32.totalorder %v41, 4
    %v360 = vsel %vm359, %v344, %v352
    %v361 = vsel %vm359, %v346, %v354
    %v362 = vsel %vm359, %v348, %v356
    %v363 = vsel %vm359, %v350, %v358
    %v364 = vsel %vm359, %v352, %v344
    %v365 = vsel %vm359, %v354, %v346
    %v366 = vsel %vm359, %v356, %v348
    %v367 = vsel %vm359, %v358, %v350
    %vm368 = vcmp.ge.s32.totalorder %v65, 4
    %vm369 = vcmp.ge.s32.totalorder %v66, 4
    %v370 = vsel %vm368, 1, 0
    %v371 = vsel %vm369, 1, 0
    %vm372 = vcmp.eq.s32.totalorder %v370, 1
    %vm373 = vcmp.eq.s32.totalorder %v371, 1
    %v374 = vsel %vm372, %v364, 0.0
    %v375 = vsel %vm373, %v360, 0.0
    %v376 = vsel %vm372, %v365, 0.0
    %v377 = vsel %vm373, %v361, 0.0
    %v378 = vsel %vm372, %v366, 0.0
    %v379 = vsel %vm373, %v362, 0.0
    %v380 = vsel %vm372, %v367, 0.0
    %v381 = vsel %vm373, %v363, 0.0
    %382 = vst [vmem:[#allocation2] sm:$0xff] %v374
    %383 = vst [vmem:[#allocation2 + $0x8] sm:$0xff] %v375
    %384 = vst [vmem:[#allocation2 + $0x10] sm:$0xff] %v376
    %385 = vst [vmem:[#allocation2 + $0x18] sm:$0xff] %v377
    %386 = vst [vmem:[#allocation2 + $0x20] sm:$0xff] %v378
    %387 = vst [vmem:[#allocation2 + $0x28] sm:$0xff] %v379
    %388 = vst [vmem:[#allocation2 + $0x30] sm:$0xff] %v380
    %389 = vst [vmem:[#allocation2 + $0x38] sm:$0xff] %v381
    %390 = vst [vmem:[#allocation2 + $0x40] sm:$0xff] %v335
    %391 = vst [vmem:[#allocation2 + $0x48] sm:$0xff] %v336
    %392 = vst [vmem:[#allocation2 + $0x50] sm:$0xff] %v337
    %393 = vst [vmem:[#allocation2 + $0x58] sm:$0xff] %v338
    %394 = vst [vmem:[#allocation2 + $0x60] sm:$0xff] %v339
    %395 = vst [vmem:[#allocation2 + $0x68] sm:$0xff] %v340
    %396 = vst [vmem:[#allocation2 + $0x70] sm:$0xff] %v341
    %397 = vst [vmem:[#allocation2 + $0x78] sm:$0xff] %v342
    %398 = vrot.lane.b32.xlu0 %v335, 124
    %v399 = vpop.permute.xlu0 %398
    %400 = vrot.lane.b32.xlu0 %v337, 124
    %v401 = vpop.permute.xlu0 %400
    %402 = vrot.lane.b32.xlu0 %v339, 124
    %v403 = vpop.permute.xlu0 %402
    %404 = vrot.lane.b32.xlu0 %v341, 124
    %v405 = vpop.permute.xlu0 %404
    %406 = vrot.lane.b32.xlu0 %v336, 124
    %v407 = vpop.permute.xlu0 %406
    %408 = vrot.lane.b32.xlu0 %v338, 124
    %v409 = vpop.permute.xlu0 %408
    %410 = vrot.lane.b32.xlu0 %v340, 124
    %v411 = vpop.permute.xlu0 %410
    %412 = vrot.lane.b32.xlu0 %v342, 124
    %v413 = vpop.permute.xlu0 %412
    %vm414 = vcmp.lt.s32.totalorder %v41, 124
    %v415 = vsel %vm414, %v399, %v407
    %v416 = vsel %vm414, %v401, %v409
    %v417 = vsel %vm414, %v403, %v411
    %v418 = vsel %vm414, %v405, %v413
    %v419 = vsel %vm414, %v407, %v399
    %v420 = vsel %vm414, %v409, %v401
    %v421 = vsel %vm414, %v411, %v403
    %v422 = vsel %vm414, %v413, %v405
    %vm423 = vcmp.lt.s32.totalorder %v65, 124
    %vm424 = vcmp.lt.s32.totalorder %v66, 124
    %v425 = vsel %vm423, 1, 0
    %v426 = vsel %vm424, 1, 0
    %vm427 = vcmp.eq.s32.totalorder %v425, 1
    %vm428 = vcmp.eq.s32.totalorder %v426, 1
    %v429 = vsel %vm427, %v415, 0.0
    %v430 = vsel %vm428, %v419, 0.0
    %v431 = vsel %vm427, %v416, 0.0
    %v432 = vsel %vm428, %v420, 0.0
    %v433 = vsel %vm427, %v417, 0.0
    %v434 = vsel %vm428, %v421, 0.0
    %v435 = vsel %vm427, %v418, 0.0
    %v436 = vsel %vm428, %v422, 0.0
    %437 = vst [vmem:[#allocation2 + $0x80] sm:$0xff] %v429
    %438 = vst [vmem:[#allocation2 + $0x88] sm:$0xff] %v430
    %439 = vst [vmem:[#allocation2 + $0x90] sm:$0xff] %v431
    %440 = vst [vmem:[#allocation2 + $0x98] sm:$0xff] %v432
    %441 = vst [vmem:[#allocation2 + $0xa0] sm:$0xff] %v433
    %442 = vst [vmem:[#allocation2 + $0xa8] sm:$0xff] %v434
    %443 = vst [vmem:[#allocation2 + $0xb0] sm:$0xff] %v435
    %444 = vst [vmem:[#allocation2 + $0xb8] sm:$0xff] %v436
    %s445 = scalar_lea.vmem [#allocation6], 32
    %v446 = vld [vmem:[%s445] sm:$0xff]
    %v447 = vld [vmem:[%s445 + $0x8] sm:$0xff]
    %v448 = vld [vmem:[%s445 + $0x10] sm:$0xff]
    %v449 = vld [vmem:[%s445 + $0x18] sm:$0xff]
    %v450 = vld [vmem:[#allocation2] sm:$0xff]
    %v451 = vld [vmem:[#allocation2 + $0x8] sm:$0xff]
    %v452 = vld [vmem:[#allocation2 + $0x10] sm:$0xff]
    %v453 = vld [vmem:[#allocation2 + $0x18] sm:$0xff]
    %v454 = vld [vmem:[#allocation2 + $0x20] sm:$0xff]
    %v455 = vld [vmem:[#allocation2 + $0x28] sm:$0xff]
    %v456 = vld [vmem:[#allocation2 + $0x30] sm:$0xff]
    %v457 = vld [vmem:[#allocation2 + $0x38] sm:$0xff]
    %v458 = vld [vmem:[#allocation2 + $0x40] sm:$0xff]
    %v459 = vld [vmem:[#allocation2 + $0x48] sm:$0xff]
    %v460 = vld [vmem:[#allocation2 + $0x50] sm:$0xff]
    %v461 = vld [vmem:[#allocation2 + $0x58] sm:$0xff]
    %v462 = vld [vmem:[#allocation2 + $0x60] sm:$0xff]
    %v463 = vld [vmem:[#allocation2 + $0x68] sm:$0xff]
    %v464 = vld [vmem:[#allocation2 + $0x70] sm:$0xff]
    %v465 = vld [vmem:[#allocation2 + $0x78] sm:$0xff]
    %v466 = vld [vmem:[#allocation2 + $0x80] sm:$0xff]
    %v467 = vld [vmem:[#allocation2 + $0x88] sm:$0xff]
    %v468 = vld [vmem:[#allocation2 + $0x90] sm:$0xff]
    %v469 = vld [vmem:[#allocation2 + $0x98] sm:$0xff]
    %v470 = vld [vmem:[#allocation2 + $0xa0] sm:$0xff]
    %v471 = vld [vmem:[#allocation2 + $0xa8] sm:$0xff]
    %v472 = vld [vmem:[#allocation2 + $0xb0] sm:$0xff]
    %v473 = vld [vmem:[#allocation2 + $0xb8] sm:$0xff]
    %v474 = vld [vmem:[#allocation2 + $0xc0] sm:$0xff]
    %v475 = vld [vmem:[#allocation2 + $0xc8] sm:$0xff]
    %v476 = vld [vmem:[#allocation2 + $0xd0] sm:$0xff]
    %v477 = vld [vmem:[#allocation2 + $0xd8] sm:$0xff]
    %v478 = vld [vmem:[#allocation2 + $0xe0] sm:$0xff]
    %v479 = vld [vmem:[#allocation2 + $0xe8] sm:$0xff]
    %v480 = vld [vmem:[#allocation2 + $0xf0] sm:$0xff]
    %v481 = vld [vmem:[#allocation2 + $0xf8] sm:$0xff]
    %482 = vmatprep.subr.mxu0 %v451
    %483 = vmatpush1.msra.mxu0 %v450
    %484 = vmatprep.subr.mxu0 %v453
    %485 = vmatpush1.msra.mxu0 %v452
    %486 = vmatprep.subr.mxu0 %v455
    %487 = vmatpush1.msra.mxu0 %v454
    %488 = vmatprep.subr.mxu0 %v457
    %489 = vmatpush1.msra.mxu0 %v456
    %490 = vmatprep.subr.mxu0 %v459
    %491 = vmatpush1.msra.mxu0 %v458
    %492 = vmatprep.subr.mxu0 %v461
    %493 = vmatpush1.msra.mxu0 %v460
    %494 = vmatprep.subr.mxu0 %v463
    %495 = vmatpush1.msra.mxu0 %v462
    %496 = vmatprep.subr.mxu0 %v465
    %497 = vmatpush1.msra.mxu0 %v464
    %498 = vmatprep.subr.mxu0 %v467
    %499 = vmatpush1.msra.mxu0 %v466
    %500 = vmatprep.subr.mxu0 %v469
    %501 = vmatpush1.msra.mxu0 %v468
    %502 = vmatprep.subr.mxu0 %v471
    %503 = vmatpush1.msra.mxu0 %v470
    %504 = vmatprep.subr.mxu0 %v473
    %505 = vmatpush1.msra.mxu0 %v472
    %506 = vmatprep.subr.mxu0 %v475
    %507 = vmatpush1.msra.mxu0 %v474
    %508 = vmatprep.subr.mxu0 %v477
    %509 = vmatpush1.msra.mxu0 %v476
    %510 = vmatprep.subr.mxu0 %v479
    %511 = vmatpush1.msra.mxu0 %v478
    %512 = vmatprep.subr.mxu0 %v481
    %513 = vmatpush1.msra.mxu0 %v480
    %514 = vmatprep.subr.mxu0 0.0
    %515 = vmatpush1.msra.mxu0 0.0
    %516 = vmatprep.subr.mxu0 0.0
    %517 = vmatpush1.msra.mxu0 0.0
    %518 = vmatprep.subr.mxu0 0.0
    %519 = vmatpush1.msra.mxu0 0.0
    %520 = vmatprep.subr.mxu0 0.0
    %521 = vmatpush1.msra.mxu0 0.0
    %522 = vmatprep.subr.mxu0 0.0
    %523 = vmatpush1.msra.mxu0 0.0
    %524 = vmatprep.subr.mxu0 0.0
    %525 = vmatpush1.msra.mxu0 0.0
    %526 = vmatprep.subr.mxu0 0.0
    %527 = vmatpush1.msra.mxu0 0.0
    %528 = vmatprep.subr.mxu0 0.0
    %529 = vmatpush1.msra.mxu0 0.0
    %530 = vmatprep.subr.mxu0 0.0
    %531 = vmatpush1.msra.mxu0 0.0
    %532 = vmatprep.subr.mxu0 0.0
    %533 = vmatpush1.msra.mxu0 0.0
    %534 = vmatprep.subr.mxu0 0.0
    %535 = vmatpush1.msra.mxu0 0.0
    %536 = vmatprep.subr.mxu0 0.0
    %537 = vmatpush1.msra.mxu0 0.0
    %538 = vmatprep.subr.mxu0 0.0
    %539 = vmatpush1.msra.mxu0 0.0
    %540 = vmatprep.subr.mxu0 0.0
    %541 = vmatpush1.msra.mxu0 0.0
    %542 = vmatprep.subr.mxu0 0.0
    %543 = vmatpush1.msra.mxu0 0.0
    %544 = vmatprep.subr.mxu0 0.0
    %545 = vmatpush1.msra.mxu0 0.0
    %546 = vmatprep.mubr.f32.mxu0 0.0
    %547 = vmatmul.mubr.f32.gmra.mrb[0].mxu0 %v446
    %v548 = vpop.f32.mrb[0].mxu0
    %v549 = vadd.f32 0.0, %v548
    %v550 = vpop.f32.mrb[0].mxu0
    %v551 = vadd.f32 0.0, %v550
    %552 = vmatprep.mubr.f32.mxu0 0.0
    %553 = vmatmul.mubr.f32.gmra.mrb[0].mxu0 %v447
    %v554 = vpop.f32.mrb[0].mxu0
    %v555 = vadd.f32 0.0, %v554
    %v556 = vpop.f32.mrb[0].mxu0
    %v557 = vadd.f32 0.0, %v556
    %558 = vmatprep.mubr.f32.mxu0 0.0
    %559 = vmatmul.mubr.f32.gmra.mrb[0].mxu0 %v448
    %v560 = vpop.f32.mrb[0].mxu0
    %v561 = vadd.f32 0.0, %v560
    %v562 = vpop.f32.mrb[0].mxu0
    %v563 = vadd.f32 0.0, %v562
    %564 = vmatprep.mubr.f32.mxu0 0.0
    %565 = vmatmul.mubr.f32.gmra.mrb[0].mxu0 %v449
    %v566 = vpop.f32.mrb[0].mxu0
    %v567 = vadd.f32 0.0, %v566
    %v568 = vpop.f32.mrb[0].mxu0
    %v569 = vadd.f32 0.0, %v568
    %570 = vdwg.mxu0
    %v571 = vmax.f32 %v549, 0.0
    %v572 = vmax.f32 %v551, 0.0
    %v573 = vmax.f32 %v555, 0.0
    %v574 = vmax.f32 %v557, 0.0
    %v575 = vmax.f32 %v561, 0.0
    %v576 = vmax.f32 %v563, 0.0
    %v577 = vmax.f32 %v567, 0.0
    %v578 = vmax.f32 %v569, 0.0
    %v579 = vadd.f32 %v571, %v335
    %v580 = vadd.f32 %v572, %v336
    %v581 = vadd.f32 %v573, %v337
    %v582 = vadd.f32 %v574, %v338
    %v583 = vadd.f32 %v575, %v339
    %v584 = vadd.f32 %v576, %v340
    %v585 = vadd.f32 %v577, %v341
    %v586 = vadd.f32 %v578, %v342
    %587 = vrot.lane.b32.xlu0 %v579, 8
    %v588 = vpop.permute.xlu0 %587
    %589 = vrot.lane.b32.xlu0 %v581, 8
    %v590 = vpop.permute.xlu0 %589
    %591 = vrot.lane.b32.xlu0 %v583, 8
    %v592 = vpop.permute.xlu0 %591
    %593 = vrot.lane.b32.xlu0 %v585, 8
    %v594 = vpop.permute.xlu0 %593
    %595 = vrot.lane.b32.xlu0 %v580, 8
    %v596 = vpop.permute.xlu0 %595
    %597 = vrot.lane.b32.xlu0 %v582, 8
    %v598 = vpop.permute.xlu0 %597
    %599 = vrot.lane.b32.xlu0 %v584, 8
    %v600 = vpop.permute.xlu0 %599
    %601 = vrot.lane.b32.xlu0 %v586, 8
    %v602 = vpop.permute.xlu0 %601
    %vm603 = vcmp.lt.s32.totalorder %v41, 8
    %v604 = vsel %vm603, %v588, %v596
    %v605 = vsel %vm603, %v590, %v598
    %v606 = vsel %vm603, %v592, %v600
    %v607 = vsel %vm603, %v594, %v602
    %v608 = vsel %vm603, %v596, %v588
    %v609 = vsel %vm603, %v598, %v590
    %v610 = vsel %vm603, %v600, %v592
    %v611 = vsel %vm603, %v602, %v594
    %vm612 = vcmp.ge.s32.totalorder %v65, 8
    %vm613 = vcmp.ge.s32.totalorder %v66, 8
    %v614 = vsel %vm612, 1, 0
    %v615 = vsel %vm613, 1, 0
    %vm616 = vcmp.eq.s32.totalorder %v614, 1
    %vm617 = vcmp.eq.s32.totalorder %v615, 1
    %v618 = vsel %vm616, %v608, 0.0
    %v619 = vsel %vm617, %v604, 0.0
    %v620 = vsel %vm616, %v609, 0.0
    %v621 = vsel %vm617, %v605, 0.0
    %v622 = vsel %vm616, %v610, 0.0
    %v623 = vsel %vm617, %v606, 0.0
    %v624 = vsel %vm616, %v611, 0.0
    %v625 = vsel %vm617, %v607, 0.0
    %626 = vst [vmem:[#allocation2] sm:$0xff] %v618
    %627 = vst [vmem:[#allocation2 + $0x8] sm:$0xff] %v619
    %628 = vst [vmem:[#allocation2 + $0x10] sm:$0xff] %v620
    %629 = vst [vmem:[#allocation2 + $0x18] sm:$0xff] %v621
    %630 = vst [vmem:[#allocation2 + $0x20] sm:$0xff] %v622
    %631 = vst [vmem:[#allocation2 + $0x28] sm:$0xff] %v623
    %632 = vst [vmem:[#allocation2 + $0x30] sm:$0xff] %v624
    %633 = vst [vmem:[#allocation2 + $0x38] sm:$0xff] %v625
    %634 = vst [vmem:[#allocation2 + $0x40] sm:$0xff] %v579
    %635 = vst [vmem:[#allocation2 + $0x48] sm:$0xff] %v580
    %636 = vst [vmem:[#allocation2 + $0x50] sm:$0xff] %v581
    %637 = vst [vmem:[#allocation2 + $0x58] sm:$0xff] %v582
    %638 = vst [vmem:[#allocation2 + $0x60] sm:$0xff] %v583
    %639 = vst [vmem:[#allocation2 + $0x68] sm:$0xff] %v584
    %640 = vst [vmem:[#allocation2 + $0x70] sm:$0xff] %v585
    %641 = vst [vmem:[#allocation2 + $0x78] sm:$0xff] %v586
    %642 = vrot.lane.b32.xlu0 %v579, 120
    %v643 = vpop.permute.xlu0 %642
    %644 = vrot.lane.b32.xlu0 %v581, 120
    %v645 = vpop.permute.xlu0 %644
    %646 = vrot.lane.b32.xlu0 %v583, 120
    %v647 = vpop.permute.xlu0 %646
    %648 = vrot.lane.b32.xlu0 %v585, 120
    %v649 = vpop.permute.xlu0 %648
    %650 = vrot.lane.b32.xlu0 %v580, 120
    %v651 = vpop.permute.xlu0 %650
    %652 = vrot.lane.b32.xlu0 %v582, 120
    %v653 = vpop.permute.xlu0 %652
    %654 = vrot.lane.b32.xlu0 %v584, 120
    %v655 = vpop.permute.xlu0 %654
    %656 = vrot.lane.b32.xlu0 %v586, 120
    %v657 = vpop.permute.xlu0 %656
    %vm658 = vcmp.lt.s32.totalorder %v41, 120
    %v659 = vsel %vm658, %v643, %v651
    %v660 = vsel %vm658, %v645, %v653
    %v661 = vsel %vm658, %v647, %v655
    %v662 = vsel %vm658, %v649, %v657
    %v663 = vsel %vm658, %v651, %v643
    %v664 = vsel %vm658, %v653, %v645
    %v665 = vsel %vm658, %v655, %v647
    %v666 = vsel %vm658, %v657, %v649
    %vm667 = vcmp.lt.s32.totalorder %v65, 120
    %vm668 = vcmp.lt.s32.totalorder %v66, 120
    %v669 = vsel %vm667, 1, 0
    %v670 = vsel %vm668, 1, 0
    %vm671 = vcmp.eq.s32.totalorder %v669, 1
    %vm672 = vcmp.eq.s32.totalorder %v670, 1
    %v673 = vsel %vm671, %v659, 0.0
    %v674 = vsel %vm672, %v663, 0.0
    %v675 = vsel %vm671, %v660, 0.0
    %v676 = vsel %vm672, %v664, 0.0
    %v677 = vsel %vm671, %v661, 0.0
    %v678 = vsel %vm672, %v665, 0.0
    %v679 = vsel %vm671, %v662, 0.0
    %v680 = vsel %vm672, %v666, 0.0
    %681 = vst [vmem:[#allocation2 + $0x80] sm:$0xff] %v673
    %682 = vst [vmem:[#allocation2 + $0x88] sm:$0xff] %v674
    %683 = vst [vmem:[#allocation2 + $0x90] sm:$0xff] %v675
    %684 = vst [vmem:[#allocation2 + $0x98] sm:$0xff] %v676
    %685 = vst [vmem:[#allocation2 + $0xa0] sm:$0xff] %v677
    %686 = vst [vmem:[#allocation2 + $0xa8] sm:$0xff] %v678
    %687 = vst [vmem:[#allocation2 + $0xb0] sm:$0xff] %v679
    %688 = vst [vmem:[#allocation2 + $0xb8] sm:$0xff] %v680
    %s689 = scalar_lea.vmem [#allocation6], 64
    %v690 = vld [vmem:[%s689] sm:$0xff]
    %v691 = vld [vmem:[%s689 + $0x8] sm:$0xff]
    %v692 = vld [vmem:[%s689 + $0x10] sm:$0xff]
    %v693 = vld [vmem:[%s689 + $0x18] sm:$0xff]
    %v694 = vld [vmem:[#allocation2] sm:$0xff]
    %v695 = vld [vmem:[#allocation2 + $0x8] sm:$0xff]
    %v696 = vld [vmem:[#allocation2 + $0x10] sm:$0xff]
    %v697 = vld [vmem:[#allocation2 + $0x18] sm:$0xff]
    %v698 = vld [vmem:[#allocation2 + $0x20] sm:$0xff]
    %v699 = vld [vmem:[#allocation2 + $0x28] sm:$0xff]
    %v700 = vld [vmem:[#allocation2 + $0x30] sm:$0xff]
    %v701 = vld [vmem:[#allocation2 + $0x38] sm:$0xff]
    %v702 = vld [vmem:[#allocation2 + $0x40] sm:$0xff]
    %v703 = vld [vmem:[#allocation2 + $0x48] sm:$0xff]
    %v704 = vld [vmem:[#allocation2 + $0x50] sm:$0xff]
    %v705 = vld [vmem:[#allocation2 + $0x58] sm:$0xff]
    %v706 = vld [vmem:[#allocation2 + $0x60] sm:$0xff]
    %v707 = vld [vmem:[#allocation2 + $0x68] sm:$0xff]
    %v708 = vld [vmem:[#allocation2 + $0x70] sm:$0xff]
    %v709 = vld [vmem:[#allocation2 + $0x78] sm:$0xff]
    %v710 = vld [vmem:[#allocation2 + $0x80] sm:$0xff]
    %v711 = vld [vmem:[#allocation2 + $0x88] sm:$0xff]
    %v712 = vld [vmem:[#allocation2 + $0x90] sm:$0xff]
    %v713 = vld [vmem:[#allocation2 + $0x98] sm:$0xff]
    %v714 = vld [vmem:[#allocation2 + $0xa0] sm:$0xff]
    %v715 = vld [vmem:[#allocation2 + $0xa8] sm:$0xff]
    %v716 = vld [vmem:[#allocation2 + $0xb0] sm:$0xff]
    %v717 = vld [vmem:[#allocation2 + $0xb8] sm:$0xff]
    %v718 = vld [vmem:[#allocation2 + $0xc0] sm:$0xff]
    %v719 = vld [vmem:[#allocation2 + $0xc8] sm:$0xff]
    %v720 = vld [vmem:[#allocation2 + $0xd0] sm:$0xff]
    %v721 = vld [vmem:[#allocation2 + $0xd8] sm:$0xff]
    %v722 = vld [vmem:[#allocation2 + $0xe0] sm:$0xff]
    %v723 = vld [vmem:[#allocation2 + $0xe8] sm:$0xff]
    %v724 = vld [vmem:[#allocation2 + $0xf0] sm:$0xff]
    %v725 = vld [vmem:[#allocation2 + $0xf8] sm:$0xff]
    %726 = vmatprep.subr.mxu0 %v695
    %727 = vmatpush1.msra.mxu0 %v694
    %728 = vmatprep.subr.mxu0 %v697
    %729 = vmatpush1.msra.mxu0 %v696
    %730 = vmatprep.subr.mxu0 %v699
    %731 = vmatpush1.msra.mxu0 %v698
    %732 = vmatprep.subr.mxu0 %v701
    %733 = vmatpush1.msra.mxu0 %v700
    %734 = vmatprep.subr.mxu0 %v703
    %735 = vmatpush1.msra.mxu0 %v702
    %736 = vmatprep.subr.mxu0 %v705
    %737 = vmatpush1.msra.mxu0 %v704
    %738 = vmatprep.subr.mxu0 %v707
    %739 = vmatpush1.msra.mxu0 %v706
    %740 = vmatprep.subr.mxu0 %v709
    %741 = vmatpush1.msra.mxu0 %v708
    %742 = vmatprep.subr.mxu0 %v711
    %743 = vmatpush1.msra.mxu0 %v710
    %744 = vmatprep.subr.mxu0 %v713
    %745 = vmatpush1.msra.mxu0 %v712
    %746 = vmatprep.subr.mxu0 %v715
    %747 = vmatpush1.msra.mxu0 %v714
    %748 = vmatprep.subr.mxu0 %v717
    %749 = vmatpush1.msra.mxu0 %v716
    %750 = vmatprep.subr.mxu0 %v719
    %751 = vmatpush1.msra.mxu0 %v718
    %752 = vmatprep.subr.mxu0 %v721
    %753 = vmatpush1.msra.mxu0 %v720
    %754 = vmatprep.subr.mxu0 %v723
    %755 = vmatpush1.msra.mxu0 %v722
    %756 = vmatprep.subr.mxu0 %v725
    %757 = vmatpush1.msra.mxu0 %v724
    %758 = vmatprep.subr.mxu0 0.0
    %759 = vmatpush1.msra.mxu0 0.0
    %760 = vmatprep.subr.mxu0 0.0
    %761 = vmatpush1.msra.mxu0 0.0
    %762 = vmatprep.subr.mxu0 0.0
    %763 = vmatpush1.msra.mxu0 0.0
    %764 = vmatprep.subr.mxu0 0.0
    %765 = vmatpush1.msra.mxu0 0.0
    %766 = vmatprep.subr.mxu0 0.0
    %767 = vmatpush1.msra.mxu0 0.0
    %768 = vmatprep.subr.mxu0 0.0
    %769 = vmatpush1.msra.mxu0 0.0
    %770 = vmatprep.subr.mxu0 0.0
    %771 = vmatpush1.msra.mxu0 0.0
    %772 = vmatprep.subr.mxu0 0.0
    %773 = vmatpush1.msra.mxu0 0.0
    %774 = vmatprep.subr.mxu0 0.0
    %775 = vmatpush1.msra.mxu0 0.0
    %776 = vmatprep.subr.mxu0 0.0
    %777 = vmatpush1.msra.mxu0 0.0
    %778 = vmatprep.subr.mxu0 0.0
    %779 = vmatpush1.msra.mxu0 0.0
    %780 = vmatprep.subr.mxu0 0.0
    %781 = vmatpush1.msra.mxu0 0.0
    %782 = vmatprep.subr.mxu0 0.0
    %783 = vmatpush1.msra.mxu0 0.0
    %784 = vmatprep.subr.mxu0 0.0
    %785 = vmatpush1.msra.mxu0 0.0
    %786 = vmatprep.subr.mxu0 0.0
    %787 = vmatpush1.msra.mxu0 0.0
    %788 = vmatprep.subr.mxu0 0.0
    %789 = vmatpush1.msra.mxu0 0.0
    %790 = vmatprep.mubr.f32.mxu0 0.0
    %791 = vmatmul.mubr.f32.gmra.mrb[0].mxu0 %v690
    %v792 = vpop.f32.mrb[0].mxu0
    %v793 = vadd.f32 0.0, %v792
    %v794 = vpop.f32.mrb[0].mxu0
    %v795 = vadd.f32 0.0, %v794
    %796 = vmatprep.mubr.f32.mxu0 0.0
    %797 = vmatmul.mubr.f32.gmra.mrb[0].mxu0 %v691
    %v798 = vpop.f32.mrb[0].mxu0
    %v799 = vadd.f32 0.0, %v798
    %v800 = vpop.f32.mrb[0].mxu0
    %v801 = vadd.f32 0.0, %v800
    %802 = vmatprep.mubr.f32.mxu0 0.0
    %803 = vmatmul.mubr.f32.gmra.mrb[0].mxu0 %v692
    %v804 = vpop.f32.mrb[0].mxu0
    %v805 = vadd.f32 0.0, %v804
    %v806 = vpop.f32.mrb[0].mxu0
    %v807 = vadd.f32 0.0, %v806
    %808 = vmatprep.mubr.f32.mxu0 0.0
    %809 = vmatmul.mubr.f32.gmra.mrb[0].mxu0 %v693
    %v810 = vpop.f32.mrb[0].mxu0
    %v811 = vadd.f32 0.0, %v810
    %v812 = vpop.f32.mrb[0].mxu0
    %v813 = vadd.f32 0.0, %v812
    %814 = vdwg.mxu0
    %v815 = vmax.f32 %v793, 0.0
    %v816 = vmax.f32 %v795, 0.0
    %v817 = vmax.f32 %v799, 0.0
    %v818 = vmax.f32 %v801, 0.0
    %v819 = vmax.f32 %v805, 0.0
    %v820 = vmax.f32 %v807, 0.0
    %v821 = vmax.f32 %v811, 0.0
    %v822 = vmax.f32 %v813, 0.0
    %v823 = vadd.f32 %v815, %v579
    %v824 = vadd.f32 %v816, %v580
    %v825 = vadd.f32 %v817, %v581
    %v826 = vadd.f32 %v818, %v582
    %v827 = vadd.f32 %v819, %v583
    %v828 = vadd.f32 %v820, %v584
    %v829 = vadd.f32 %v821, %v585
    %v830 = vadd.f32 %v822, %v586
    %831 = vst [vmem:[#allocation8] sm:$0xff] %v823
    %832 = vst [vmem:[#allocation8 + $0x8] sm:$0xff] %v824
    %833 = vst [vmem:[#allocation8 + $0x10] sm:$0xff] %v825
    %834 = vst [vmem:[#allocation8 + $0x18] sm:$0xff] %v826
    %835 = vst [vmem:[#allocation8 + $0x20] sm:$0xff] %v827
    %836 = vst [vmem:[#allocation8 + $0x28] sm:$0xff] %v828
    %837 = vst [vmem:[#allocation8 + $0x30] sm:$0xff] %v829
    %838 = vst [vmem:[#allocation8 + $0x38] sm:$0xff] %v830
    // Predicated region
    $region18: #{tpu_custom_call.1} parent=1 // pred_check
      _
    $region19: #{tpu_custom_call.1} parent=1 // pred_check_branch
      %840 = sbr.rel (0) target = $region21
    $region20: #{tpu_custom_call.1} parent=1 // pred_region
      %s842 = ssub.s32 1024, 1024
      %843 = vsyncadd [#allocation5], %s842
      %s844 = sshll.u32 [#allocation8], 4
      %s845 = int_to_ptr.vmem [resolvable:$true] %s844
      %850 = dma.vmem_to_hbm [thread:$0]  %s845, 1024, %s2, [#allocation5], 256, 256, 16
    $region21: #{tpu_custom_call.1} parent=1 // pred_fallthru
      _
    // Predicated region
    $region22: #{tpu_custom_call.1} parent=1 // pred_check
      _
    $region23: #{tpu_custom_call.1} parent=1 // pred_check_branch
      %852 = sbr.rel (0) target = $region25
    $region24: #{tpu_custom_call.1} parent=1 // pred_region
      %853 = dma.done [#allocation5], 1024
    $region25: #{tpu_custom_call.1} parent=1 // pred_fallthru
      _
    %854 = vsyncpa [#allocation4], 1
    %855 = vsyncpa [#allocation7], 1
    %856 = vsyncpa [#allocation5], 1

</llo_original>
